<compile_context>
chip_gen: v6e
topology: v6e:2x2x1
jax: 0.10.0
libtpu: 0.0.40
codegen_flags: <defaults>
</compile_context>

<pallas_src>
import functools

import jax
import jax.numpy as jnp
from jax.experimental import pallas as pl
from jax.experimental.pallas import tpu as pltpu

_NEG = -1e30  # finite "-inf" so masked-class arithmetic never produces NaN


def _dce_kernel(x_ref, w_ref, b_ref, tgt_ref, mask_ref, loss_ref,
                m_sc, l_sc, p_sc, *, num_classes, block_c):
    """One (row-tile, class-tile) grid step of fused linear + CE(+mask)."""
    j = pl.program_id(1)

    @pl.when(j == 0)
    def _():
        m_sc[...] = jnp.full_like(m_sc, _NEG)   # running max
        l_sc[...] = jnp.zeros_like(l_sc)        # running sum(exp)
        p_sc[...] = jnp.zeros_like(p_sc)        # picked logit at target class

    # Linear for this class tile: (tm, In) @ (In, tc) -> (tm, tc), f32 accum on MXU.
    logits = jnp.dot(x_ref[...], w_ref[...], preferred_element_type=jnp.float32)
    logits = logits + b_ref[...]                # (1, tc) broadcast

    # Global class ids of this tile's columns; mask out class padding.
    col = jax.lax.broadcasted_iota(jnp.int32, logits.shape, 1) + j * block_c
    logits = jnp.where(col < num_classes, logits, _NEG)

    # "Gather" logits[i, target[i]] via compare + masked sum (exactly one hit
    # across all class tiles; padded rows/classes never hit).
    tgt = tgt_ref[...]                          # (tm, 1) int32
    p_sc[...] += jnp.sum(jnp.where(col == tgt, logits, 0.0),
                         axis=-1, keepdims=True)

    # Online logsumexp update (flash-softmax style).
    m_prev = m_sc[...]
    m_new = jnp.maximum(m_prev, jnp.max(logits, axis=-1, keepdims=True))
    l_sc[...] = (l_sc[...] * jnp.exp(m_prev - m_new)
                 + jnp.sum(jnp.exp(logits - m_new), axis=-1, keepdims=True))
    m_sc[...] = m_new

    @pl.when(j == pl.num_programs(1) - 1)
    def _():
        lse = m_sc[...] + jnp.log(l_sc[...])               # (tm, 1)
        loss = (lse - p_sc[...]) * mask_ref[...]           # mask==1 when None
        loss_ref[...] = loss.astype(loss_ref.dtype)


def _round_up(x, m):
    return (x + m - 1) // m * m


def discrete_cross_entropy_loss(x, target, w, b, mask=None,
                                *, block_rows=256, block_classes=512):
    """Fused nn.Linear + CrossEntropyLoss(reduction='none') (+ optional mask).

    x:      (N, in_features)
    target: (N,) int class indices
    w:      (in_features, num_classes)   == torch Linear.weight.T
    b:      (num_classes,)
    mask:   optional (N,) multiplier
    returns (N,) float32 per-example loss
    """
    N, In = x.shape
    assert w.shape[0] == In
    C = w.shape[1]

    # Row (token) tiling: tm multiple of 8, tm | padded_N.
    pn = _round_up(N, 8)
    tm = min(block_rows, pn)
    pn = _round_up(pn, tm)

    # Class tiling: tc multiple of 128 (lane-dense), tc | padded_C.
    pc = _round_up(C, 128)
    tc = min(block_classes, pc)
    pc = _round_up(pc, tc)

    # Host-side zero padding (one-time, tiny vs. the fused kernel's work).
    xf = x if pn == N else jnp.zeros((pn, In), x.dtype).at[:N].set(x)
    wf = w if pc == C else jnp.zeros((In, pc), w.dtype).at[:, :C].set(w)
    bf = jnp.zeros((1, pc), jnp.float32).at[0, :C].set(b.astype(jnp.float32))
    tf = jnp.zeros((pn, 1), jnp.int32).at[:N, 0].set(target.astype(jnp.int32))
    if mask is None:
        mf = jnp.ones((pn, 1), jnp.float32)
    else:
        mf = jnp.zeros((pn, 1), jnp.float32).at[:N, 0].set(
            mask.astype(jnp.float32))

    grid = (pn // tm, pc // tc)

    loss = pl.pallas_call(
        functools.partial(_dce_kernel, num_classes=C, block_c=tc),
        grid=grid,
        in_specs=[
            pl.BlockSpec((tm, In), lambda i, j: (i, 0)),   # x  (re-streamed per class tile)
            pl.BlockSpec((In, tc), lambda i, j: (0, j)),   # W
            pl.BlockSpec((1, tc), lambda i, j: (0, j)),    # b
            pl.BlockSpec((tm, 1), lambda i, j: (i, 0)),    # target
            pl.BlockSpec((tm, 1), lambda i, j: (i, 0)),    # mask
        ],
        # Same output block across the class axis -> resident accumulator,
        # written once at the final class tile. Output is only N*4 bytes, so
        # the narrow (tm, 1) store is negligible HBM traffic.
        out_specs=pl.BlockSpec((tm, 1), lambda i, j: (i, 0)),
        out_shape=jax.ShapeDtypeStruct((pn, 1), jnp.float32),
        scratch_shapes=[pltpu.VMEM((tm, 1), jnp.float32)] * 3,  # m, l, picked
        compiler_params=pltpu.CompilerParams(
            dimension_semantics=("parallel", "arbitrary"),
            vmem_limit_bytes=32 * 1024 * 1024),
    )(xf, wf, bf, tf, mf)

    return loss[:N, 0]


if __name__ == "__main__":
    # Small shapes implied by the module: x is (batch*seq, in_features).
    B, L = 2, 8
    N = B * L
    in_features, num_classes = 32, 10

    key = jax.random.PRNGKey(0)
    kx, kw, kb, kt, km = jax.random.split(key, 5)
    x = jax.random.normal(kx, (N, in_features), jnp.float32)
    # Stored pre-transposed: torch Linear computes x @ W.T + b; here w == W.T.
    w = 0.1 * jax.random.normal(kw, (in_features, num_classes), jnp.float32)
    b = 0.1 * jax.random.normal(kb, (num_classes,), jnp.float32)
    target = jax.random.randint(kt, (N,), 0, num_classes, dtype=jnp.int32)
    mask = (jax.random.uniform(km, (N,)) > 0.5).astype(jnp.float32)

    loss = discrete_cross_entropy_loss(x, target, w, b, mask)
    jax.block_until_ready(loss)
    assert loss.shape == (N,)

    # Pure-JAX reference (same math as torch CrossEntropyLoss(reduction='none')).
    logits = x @ w + b
    lse = jax.scipy.special.logsumexp(logits, axis=-1)
    picked = jnp.take_along_axis(logits, target[:, None], axis=-1)[:, 0]
    ref = (lse - picked) * mask
    assert jnp.allclose(loss, ref, atol=1e-3, rtol=1e-3), (loss, ref)

    # mask=None path (PyTorch returns the unmasked per-example loss).
    loss_nomask = discrete_cross_entropy_loss(x, target, w, b, None)
    jax.block_until_ready(loss_nomask)
    assert jnp.allclose(loss_nomask, lse - picked, atol=1e-3, rtol=1e-3)

    print("KERNEL_OK")
</pallas_src>

<mosaic_0001>
module attributes {stable_mosaic.version = 11 : i64} {
  func.func @_dce_kernel(%arg0: i32, %arg1: i32, %arg2: memref<16x32xf32, #tpu.memory_space<vmem>>, %arg3: memref<32x128xf32, #tpu.memory_space<vmem>>, %arg4: memref<1x128xf32, #tpu.memory_space<vmem>>, %arg5: memref<16x1xi32, #tpu.memory_space<vmem>>, %arg6: memref<16x1xf32, #tpu.memory_space<vmem>>, %arg7: memref<16x1xf32, #tpu.memory_space<vmem>>, %arg8: memref<16x1xf32, #tpu.memory_space<vmem>>, %arg9: memref<16x1xf32, #tpu.memory_space<vmem>>, %arg10: memref<16x1xf32, #tpu.memory_space<vmem>>) attributes {dimension_semantics = [#tpu.dimension_semantics<parallel>, #tpu.dimension_semantics<arbitrary>], iteration_bounds = array<i64: 1, 1>, scalar_prefetch = 0 : i64, scratch_operands = 3 : i64, tpu.core_type = #tpu.core_type<tc>, window_params = [{transform_indices = @transform_0, window_bounds = array<i64: 16, 32>}, {transform_indices = @transform_1, window_bounds = array<i64: 32, 128>}, {transform_indices = @transform_2, window_bounds = array<i64: 1, 128>}, {transform_indices = @transform_3, window_bounds = array<i64: 16, 1>}, {transform_indices = @transform_4, window_bounds = array<i64: 16, 1>}, {transform_indices = @transform_5, window_bounds = array<i64: 16, 1>}]} {
    %c0_i32 = arith.constant 0 : i32
    %0 = arith.cmpi eq, %arg1, %c0_i32 : i32
    %1 = arith.extui %0 : i1 to i32
    %c0_i32_0 = arith.constant 0 : i32
    %2 = arith.cmpi ne, %1, %c0_i32_0 : i32
    scf.if %2 {
      %cst_27 = arith.constant -1.000000e+30 : f32
      %46 = vector.broadcast %cst_27 : f32 to vector<16x1xf32>
      %c0_28 = arith.constant 0 : index
      %c0_29 = arith.constant 0 : index
      %47 = vector.load %arg8[%c0_28, %c0_29] : memref<16x1xf32, #tpu.memory_space<vmem>>, vector<16x1xf32>
      tpu.vector_store %arg8[%c0_28, %c0_29], %46 {strides = array<i32>} : memref<16x1xf32, #tpu.memory_space<vmem>>, vector<16x1xf32>,
      %cst_30 = arith.constant 0.000000e+00 : f32
      %48 = vector.broadcast %cst_30 : f32 to vector<16x1xf32>
      %c0_31 = arith.constant 0 : index
      %c0_32 = arith.constant 0 : index
      %49 = vector.load %arg9[%c0_31, %c0_32] : memref<16x1xf32, #tpu.memory_space<vmem>>, vector<16x1xf32>
      tpu.vector_store %arg9[%c0_31, %c0_32], %48 {strides = array<i32>} : memref<16x1xf32, #tpu.memory_space<vmem>>, vector<16x1xf32>,
      %cst_33 = arith.constant 0.000000e+00 : f32
      %50 = vector.broadcast %cst_33 : f32 to vector<16x1xf32>
      %c0_34 = arith.constant 0 : index
      %c0_35 = arith.constant 0 : index
      %51 = vector.load %arg10[%c0_34, %c0_35] : memref<16x1xf32, #tpu.memory_space<vmem>>, vector<16x1xf32>
      tpu.vector_store %arg10[%c0_34, %c0_35], %50 {strides = array<i32>} : memref<16x1xf32, #tpu.memory_space<vmem>>, vector<16x1xf32>,
    } else {
    }
    %c0 = arith.constant 0 : index
    %c0_1 = arith.constant 0 : index
    %3 = vector.load %arg2[%c0, %c0_1] : memref<16x32xf32, #tpu.memory_space<vmem>>, vector<16x32xf32>
    %c0_2 = arith.constant 0 : index
    %c0_3 = arith.constant 0 : index
    %4 = vector.load %arg3[%c0_2, %c0_3] : memref<32x128xf32, #tpu.memory_space<vmem>>, vector<32x128xf32>
    %cst = arith.constant dense<0.000000e+00> : vector<16x128xf32>
    %5 = tpu.matmul %3, %4, %cst {dimension_numbers = #tpu.dot_dimension_numbers<[1], [0], [0], [1], [0, 0, 1, 1], [], []>} : vector<16x32xf32>, vector<32x128xf32>, vector<16x128xf32> -> vector<16x128xf32>
    %c0_4 = arith.constant 0 : index
    %c0_5 = arith.constant 0 : index
    %6 = vector.load %arg4[%c0_4, %c0_5] : memref<1x128xf32, #tpu.memory_space<vmem>>, vector<1x128xf32>
    %7 = vector.broadcast %6 : vector<1x128xf32> to vector<16x128xf32>
    %8 = arith.addf %5, %7 : vector<16x128xf32>
    %9 = tpu.iota {dimensions = array<i32: 1>} : vector<16x128xi32>
    %c128_i32 = arith.constant 128 : i32
    %10 = arith.muli %arg1, %c128_i32 : i32
    %11 = vector.broadcast %10 : i32 to vector<16x128xi32>
    %12 = arith.addi %9, %11 : vector<16x128xi32>
    %c10_i32 = arith.constant 10 : i32
    %13 = vector.broadcast %c10_i32 : i32 to vector<16x128xi32>
    %14 = arith.cmpi slt, %12, %13 : vector<16x128xi32>
    %cst_6 = arith.constant -1.000000e+30 : f32
    %15 = vector.broadcast %cst_6 : f32 to vector<16x128xf32>
    %16 = arith.select %14, %8, %15 : vector<16x128xi1>, vector<16x128xf32>
    %c0_7 = arith.constant 0 : index
    %c0_8 = arith.constant 0 : index
    %17 = vector.load %arg5[%c0_7, %c0_8] : memref<16x1xi32, #tpu.memory_space<vmem>>, vector<16x1xi32>
    %c0_9 = arith.constant 0 : index
    %c0_10 = arith.constant 0 : index
    %18 = vector.load %arg10[%c0_9, %c0_10] : memref<16x1xf32, #tpu.memory_space<vmem>>, vector<16x1xf32>
    %19 = vector.broadcast %17 : vector<16x1xi32> to vector<16x128xi32>
    %20 = arith.cmpi eq, %12, %19 : vector<16x128xi32>
    %cst_11 = arith.constant 0.000000e+00 : f32
    %21 = vector.broadcast %cst_11 : f32 to vector<16x128xf32>
    %22 = arith.select %20, %16, %21 : vector<16x128xi1>, vector<16x128xf32>
    %cst_12 = arith.constant dense<0.000000e+00> : vector<16xf32>
    %23 = vector.multi_reduction <add>, %22, %cst_12 [1] : vector<16x128xf32> to vector<16xf32>
    %24 = vector.shape_cast %23 : vector<16xf32> to vector<16x1xf32>
    %25 = arith.addf %18, %24 : vector<16x1xf32>
    %c0_13 = arith.constant 0 : index
    %c0_14 = arith.constant 0 : index
    %26 = vector.load %arg10[%c0_13, %c0_14] : memref<16x1xf32, #tpu.memory_space<vmem>>, vector<16x1xf32>
    tpu.vector_store %arg10[%c0_13, %c0_14], %25 {strides = array<i32>} : memref<16x1xf32, #tpu.memory_space<vmem>>, vector<16x1xf32>,
    %c0_15 = arith.constant 0 : index
    %c0_16 = arith.constant 0 : index
    %27 = vector.load %arg8[%c0_15, %c0_16] : memref<16x1xf32, #tpu.memory_space<vmem>>, vector<16x1xf32>
    %cst_17 = arith.constant dense<0xFF800000> : vector<16xf32>
    %28 = vector.multi_reduction <maximumf>, %16, %cst_17 [1] : vector<16x128xf32> to vector<16xf32>
    %29 = vector.shape_cast %28 : vector<16xf32> to vector<16x1xf32>
    %30 = arith.maximumf %27, %29 : vector<16x1xf32>
    %c0_18 = arith.constant 0 : index
    %c0_19 = arith.constant 0 : index
    %31 = vector.load %arg9[%c0_18, %c0_19] : memref<16x1xf32, #tpu.memory_space<vmem>>, vector<16x1xf32>
    %32 = arith.subf %27, %30 : vector<16x1xf32>
    %33 = math.exp %32 : vector<16x1xf32>
    %34 = arith.mulf %31, %33 : vector<16x1xf32>
    %35 = vector.broadcast %30 : vector<16x1xf32> to vector<16x128xf32>
    %36 = arith.subf %16, %35 : vector<16x128xf32>
    %37 = math.exp %36 : vector<16x128xf32>
    %cst_20 = arith.constant dense<0.000000e+00> : vector<16xf32>
    %38 = vector.multi_reduction <add>, %37, %cst_20 [1] : vector<16x128xf32> to vector<16xf32>
    %39 = vector.shape_cast %38 : vector<16xf32> to vector<16x1xf32>
    %40 = arith.addf %34, %39 : vector<16x1xf32>
    %c0_21 = arith.constant 0 : index
    %c0_22 = arith.constant 0 : index
    %41 = vector.load %arg9[%c0_21, %c0_22] : memref<16x1xf32, #tpu.memory_space<vmem>>, vector<16x1xf32>
    tpu.vector_store %arg9[%c0_21, %c0_22], %40 {strides = array<i32>} : memref<16x1xf32, #tpu.memory_space<vmem>>, vector<16x1xf32>,
    %c0_23 = arith.constant 0 : index
    %c0_24 = arith.constant 0 : index
    %42 = vector.load %arg8[%c0_23, %c0_24] : memref<16x1xf32, #tpu.memory_space<vmem>>, vector<16x1xf32>
    tpu.vector_store %arg8[%c0_23, %c0_24], %30 {strides = array<i32>} : memref<16x1xf32, #tpu.memory_space<vmem>>, vector<16x1xf32>,
    %c0_i32_25 = arith.constant 0 : i32
    %43 = arith.cmpi eq, %arg1, %c0_i32_25 : i32
    %44 = arith.extui %43 : i1 to i32
    %c0_i32_26 = arith.constant 0 : i32
    %45 = arith.cmpi ne, %44, %c0_i32_26 : i32
    scf.if %45 {
      %c0_27 = arith.constant 0 : index
      %c0_28 = arith.constant 0 : index
      %46 = vector.load %arg8[%c0_27, %c0_28] : memref<16x1xf32, #tpu.memory_space<vmem>>, vector<16x1xf32>
      %c0_29 = arith.constant 0 : index
      %c0_30 = arith.constant 0 : index
      %47 = vector.load %arg9[%c0_29, %c0_30] : memref<16x1xf32, #tpu.memory_space<vmem>>, vector<16x1xf32>
      %48 = math.log %47 : vector<16x1xf32>
      %49 = arith.addf %46, %48 : vector<16x1xf32>
      %c0_31 = arith.constant 0 : index
      %c0_32 = arith.constant 0 : index
      %50 = vector.load %arg10[%c0_31, %c0_32] : memref<16x1xf32, #tpu.memory_space<vmem>>, vector<16x1xf32>
      %51 = arith.subf %49, %50 : vector<16x1xf32>
      %c0_33 = arith.constant 0 : index
      %c0_34 = arith.constant 0 : index
      %52 = vector.load %arg6[%c0_33, %c0_34] : memref<16x1xf32, #tpu.memory_space<vmem>>, vector<16x1xf32>
      %53 = arith.mulf %51, %52 : vector<16x1xf32>
      %c0_35 = arith.constant 0 : index
      %c0_36 = arith.constant 0 : index
      %54 = vector.load %arg7[%c0_35, %c0_36] : memref<16x1xf32, #tpu.memory_space<vmem>>, vector<16x1xf32>
      tpu.vector_store %arg7[%c0_35, %c0_36], %53 {strides = array<i32>} : memref<16x1xf32, #tpu.memory_space<vmem>>, vector<16x1xf32>,
    } else {
    }
    return
  }
  func.func @transform_0(%arg0: i32, %arg1: i32) -> (i32, i32) {
    %c0_i32 = arith.constant 0 : i32
    %c0_i32_0 = arith.constant 0 : i32
    return %arg0, %c0_i32 : i32, i32
  }
  func.func @transform_1(%arg0: i32, %arg1: i32) -> (i32, i32) {
    %c0_i32 = arith.constant 0 : i32
    %c0_i32_0 = arith.constant 0 : i32
    return %c0_i32, %arg1 : i32, i32
  }
  func.func @transform_2(%arg0: i32, %arg1: i32) -> (i32, i32) {
    %c0_i32 = arith.constant 0 : i32
    %c0_i32_0 = arith.constant 0 : i32
    return %c0_i32, %arg1 : i32, i32
  }
  func.func @transform_3(%arg0: i32, %arg1: i32) -> (i32, i32) {
    %c0_i32 = arith.constant 0 : i32
    %c0_i32_0 = arith.constant 0 : i32
    return %arg0, %c0_i32 : i32, i32
  }
  func.func @transform_4(%arg0: i32, %arg1: i32) -> (i32, i32) {
    %c0_i32 = arith.constant 0 : i32
    %c0_i32_0 = arith.constant 0 : i32
    return %arg0, %c0_i32 : i32, i32
  }
  func.func @transform_5(%arg0: i32, %arg1: i32) -> (i32, i32) {
    %c0_i32 = arith.constant 0 : i32
    %c0_i32_0 = arith.constant 0 : i32
    return %arg0, %c0_i32 : i32, i32
  }
}

</mosaic_0001>

<llo_original>
// kernel: tpu_custom_call.1
$region0: #{tpu_custom_call.1}
  #allocation0 [shape = 'u32[]', space=smem, size = 0x4, offset = 0x4, fixed_abs, tag = 'smem constant byte address 0x4 - core index']
  #allocation1 [shape = 'u32[144,128]{1,0:T(1,128)}', space=vmem, size = 0x12000, scoped, tag = 'internal scratch']
  #allocation2 [shape = 'f32[16,1]{1,0:T(8,128)}', space=vmem, size = 0x2000, scoped, tag = 'scratch operand']
  #allocation3 [shape = 'f32[16,1]{1,0:T(8,128)}', space=vmem, size = 0x2000, scoped, tag = 'scratch operand']
  #allocation4 [shape = 'f32[16,1]{1,0:T(8,128)}', space=vmem, size = 0x2000, scoped, tag = 'scratch operand']
  %s0 = inlined_call_operand.hbm [shape: f32[16,32], index: 0, kind: input, shape index: {}]
  %s1 = inlined_call_operand.vmem [shape: f32[32,128], index: 1, kind: input, shape index: {}]
  %s2 = inlined_call_operand.vmem [shape: f32[1,128], index: 2, kind: input, shape index: {}]
  %s3 = inlined_call_operand.vmem [shape: s32[16,1], index: 3, kind: input, shape index: {}]
  %s4 = inlined_call_operand.vmem [shape: f32[16,1], index: 4, kind: input, shape index: {}]
  %s5 = inlined_call_operand.vmem [shape: f32[16,1], index: 5, kind: output, shape index: {}]
  %s6 = sld [smem:[#allocation0]]
  $region42: #{tpu_custom_call.1} parent=0
    _
  %s8 = ssub.s32 1, %s6
  %s9 = scalar_select 0, %s8, %s6
  $region1: #{tpu_custom_call.1} parent=0
    #allocation5 [shape = 'u8[8192]{0}', space=vmem, size = 0x2000, scoped, tag = 'input window, operand 0, single buffered']
    #allocation6 [shape = 's32[1]{0}', space=sflag, size = 0x4, scoped, tag = 'scoped memory for tpu_custom_call.1']
    %10 = vsyncpa [#allocation6], 0
    // Predicated region
    $region2: #{tpu_custom_call.1} parent=1 // pred_check
      _
    $region3: #{tpu_custom_call.1} parent=1 // pred_check_branch
      %12 = sbr.rel (0) target = $region5
    $region4: #{tpu_custom_call.1} parent=1 // pred_region
      %s14 = ssub.s32 256, 256
      %15 = vsyncadd [#allocation6], %s14
      %s16 = sshll.u32 [#allocation5], 4
      %s17 = int_to_ptr.vmem [resolvable:$true] %s16
      %22 = dma.hbm_to_vmem [thread:$0]  %s0, 256, %s17, [#allocation6], 128, 128, 8
    $region5: #{tpu_custom_call.1} parent=1 // pred_fallthru
      _
    // Predicated region
    $region6: #{tpu_custom_call.1} parent=1 // pred_check
      _
    $region7: #{tpu_custom_call.1} parent=1 // pred_check_branch
      %24 = sbr.rel (0) target = $region9
    $region8: #{tpu_custom_call.1} parent=1 // pred_region
      _
    $region9: #{tpu_custom_call.1} parent=1 // pred_fallthru
      _
    // Predicated region
    $region10: #{tpu_custom_call.1} parent=1 // pred_check
      _
    $region11: #{tpu_custom_call.1} parent=1 // pred_check_branch
      %26 = sbr.rel (0) target = $region13
    $region12: #{tpu_custom_call.1} parent=1 // pred_region
      _
    $region13: #{tpu_custom_call.1} parent=1 // pred_fallthru
      _
    // Predicated region
    $region14: #{tpu_custom_call.1} parent=1 // pred_check
      _
    $region15: #{tpu_custom_call.1} parent=1 // pred_check_branch
      %28 = sbr.rel (0) target = $region17
    $region16: #{tpu_custom_call.1} parent=1 // pred_region
      _
    $region17: #{tpu_custom_call.1} parent=1 // pred_fallthru
      _
    // Predicated region
    $region18: #{tpu_custom_call.1} parent=1 // pred_check
      _
    $region19: #{tpu_custom_call.1} parent=1 // pred_check_branch
      %30 = sbr.rel (0) target = $region21
    $region20: #{tpu_custom_call.1} parent=1 // pred_region
      _
    $region21: #{tpu_custom_call.1} parent=1 // pred_fallthru
      _
    // Predicated region
    $region22: #{tpu_custom_call.1} parent=1 // pred_check
      _
    $region23: #{tpu_custom_call.1} parent=1 // pred_check_branch
      %32 = sbr.rel (0) target = $region25
    $region24: #{tpu_custom_call.1} parent=1 // pred_region
      %33 = dma.done [#allocation6], 256
    $region25: #{tpu_custom_call.1} parent=1 // pred_fallthru
      _
    %p34 = scmp.eq.s32.totalorder 0, 0
    // Predicated region
    $region26: #{tpu_custom_call.1} parent=1 // pred_check
      %p35 = pneg %p34
    $region27: #{tpu_custom_call.1} parent=1 // pred_check_branch
      %37 = sbr.rel (%p35) target = $region29
    $region28: #{tpu_custom_call.1} parent=1 // pred_region
      %vm38 = vcmask 7168
      %39 = vst.msk [vmem:[#allocation2] sm:$0xff] %vm38, -1e+30
      %40 = vst.msk [vmem:[#allocation2 + $0x8] sm:$0xff] %vm38, -1e+30
      %41 = vst.msk [vmem:[#allocation3] sm:$0xff] %vm38, 0.0
      %42 = vst.msk [vmem:[#allocation3 + $0x8] sm:$0xff] %vm38, 0.0
      %43 = vst.msk [vmem:[#allocation4] sm:$0xff] %vm38, 0.0
      %44 = vst.msk [vmem:[#allocation4 + $0x8] sm:$0xff] %vm38, 0.0
    $region29: #{tpu_custom_call.1} parent=1 // pred_fallthru
      _
    %v45 = vld [vmem:[#allocation5] sm:$0xff]
    %v46 = vld [vmem:[#allocation5 + $0x8] sm:$0xff]
    %v47 = vld [vmem:[%s1] sm:$0xff]
    %v48 = vld [vmem:[%s1 + $0x8] sm:$0xff]
    %v49 = vld [vmem:[%s1 + $0x10] sm:$0xff]
    %v50 = vld [vmem:[%s1 + $0x18] sm:$0xff]
    %v51 = vld [vmem:[%s2] sm:$0x1]
    %v53 = vlaneseq
    %v54 = vshrl.u32 %v53, 7
    %v55 = vsub.s32 0, %v54
    %v56 = vrot.slane %v51, %v55
    %vm58 = vcmask 261120
    %v60 = vsel %vm58, %v45, 0
    %v63 = vsel %vm58, %v46, 0
    %65 = vmatprep.subr.mxu0 0.0
    %66 = vmatpush1.msra.mxu0 0.0
    %67 = vmatprep.subr.mxu0 0.0
    %68 = vmatpush1.msra.mxu0 0.0
    %69 = vmatprep.subr.mxu0 0.0
    %70 = vmatpush1.msra.mxu0 0.0
    %71 = vmatprep.subr.mxu0 0.0
    %72 = vmatpush1.msra.mxu0 0.0
    %73 = vmatprep.subr.mxu0 0.0
    %74 = vmatpush1.msra.mxu0 0.0
    %75 = vmatprep.subr.mxu0 0.0
    %76 = vmatpush1.msra.mxu0 0.0
    %77 = vmatprep.subr.mxu0 0.0
    %78 = vmatpush1.msra.mxu0 0.0
    %79 = vmatprep.subr.mxu0 0.0
    %80 = vmatpush1.msra.mxu0 0.0
    %81 = vmatprep.subr.mxu0 0.0
    %82 = vmatpush1.msra.mxu0 0.0
    %83 = vmatprep.subr.mxu0 0.0
    %84 = vmatpush1.msra.mxu0 0.0
    %85 = vmatprep.subr.mxu0 0.0
    %86 = vmatpush1.msra.mxu0 0.0
    %87 = vmatprep.subr.mxu0 0.0
    %88 = vmatpush1.msra.mxu0 0.0
    %89 = vmatprep.subr.mxu0 0.0
    %90 = vmatpush1.msra.mxu0 %v50
    %91 = vmatprep.subr.mxu0 0.0
    %92 = vmatpush1.msra.mxu0 %v49
    %93 = vmatprep.subr.mxu0 0.0
    %94 = vmatpush1.msra.mxu0 %v48
    %95 = vmatprep.subr.mxu0 0.0
    %96 = vmatpush1.msra.mxu0 %v47
    %97 = vmatprep.subr.mxu0 0.0
    %98 = vmatpush2.msra.mxu0 0.0
    %99 = vmatprep.subr.mxu0 0.0
    %100 = vmatpush2.msra.mxu0 0.0
    %101 = vmatprep.subr.mxu0 0.0
    %102 = vmatpush2.msra.mxu0 0.0
    %103 = vmatprep.subr.mxu0 0.0
    %104 = vmatpush2.msra.mxu0 0.0
    %105 = vmatprep.subr.mxu0 0.0
    %106 = vmatpush2.msra.mxu0 0.0
    %107 = vmatprep.subr.mxu0 0.0
    %108 = vmatpush2.msra.mxu0 0.0
    %109 = vmatprep.subr.mxu0 0.0
    %110 = vmatpush2.msra.mxu0 0.0
    %111 = vmatprep.subr.mxu0 0.0
    %112 = vmatpush2.msra.mxu0 0.0
    %113 = vmatprep.subr.mxu0 0.0
    %114 = vmatpush2.msra.mxu0 0.0
    %115 = vmatprep.subr.mxu0 0.0
    %116 = vmatpush2.msra.mxu0 0.0
    %117 = vmatprep.subr.mxu0 0.0
    %118 = vmatpush2.msra.mxu0 0.0
    %119 = vmatprep.subr.mxu0 0.0
    %120 = vmatpush2.msra.mxu0 0.0
    %121 = vmatprep.subr.mxu0 0.0
    %122 = vmatpush2.msra.mxu0 0.0
    %123 = vmatprep.subr.mxu0 0.0
    %124 = vmatpush2.msra.mxu0 0.0
    %125 = vmatprep.subr.mxu0 0.0
    %126 = vmatpush2.msra.mxu0 0.0
    %127 = vmatprep.subr.mxu0 0.0
    %128 = vmatpush2.msra.mxu0 0.0
    %129 = vmatprep.mubr.f32.mxu0 0.0
    %130 = vmatmul.mubr.f32.gmra.mxu0 %v60
    %v131 = vpop.f32.mrf.mxu0
    %v132 = vadd.f32 %v56, %v131
    %v133 = vpop.f32.mrf.mxu0
    %134 = vmatprep.mubr.f32.mxu0 0.0
    %135 = vmatmul.mubr.f32.gmra.mxu0 %v63
    %v136 = vpop.f32.mrf.mxu0
    %v137 = vadd.f32 %v56, %v136
    %v138 = vpop.f32.mrf.mxu0
    %139 = vdwg.mxu0
    %v140 = vlaneseq
    %v141 = vand.u32 %v140, 127
    %s142 = smul.u32 0, 128
    %v143 = vstv %s142
    %v144 = vadd.s32 %v141, %v143
    %vm145 = vcmp.lt.s32.totalorder %v144, 10
    %v146 = vsel %vm145, %v132, -1e+30
    %v147 = vsel %vm145, %v137, -1e+30
    %v148 = vld [vmem:[%s3] sm:$0xff]
    %v149 = vld [vmem:[%s3 + $0x8] sm:$0xff]
    %v150 = vld [vmem:[#allocation4] sm:$0xff]
    %v151 = vld [vmem:[#allocation4 + $0x8] sm:$0xff]
    %152 = vset.pattern.permute.xlu0 0
    %153 = vperm.xlu0 %152, %v148
    %v154 = vpop.permute.xlu0 %153
    %155 = vset.pattern.permute.xlu0 0
    %156 = vperm.xlu0 %155, %v149
    %v157 = vpop.permute.xlu0 %156
    %vm158 = vcmp.eq.s32.totalorder %v144, %v154
    %vm159 = vcmp.eq.s32.totalorder %v144, %v157
    %v160 = vsel %vm158, %v146, 0.0
    %v161 = vsel %vm159, %v147, 0.0
    %162 = vadd.xlane.f32.xlu0 %v160
    %v163 = vpop.xlane.xlu0 %162
    %164 = vadd.xlane.f32.xlu0 %v161
    %v165 = vpop.xlane.xlu0 %164
    %v166 = vadd.f32 %v150, %v163
    %v167 = vadd.f32 %v151, %v165
    %vm168 = vcmask 7168
    %169 = vst.msk [vmem:[#allocation4] sm:$0xff] %vm168, %v166
    %170 = vst.msk [vmem:[#allocation4 + $0x8] sm:$0xff] %vm168, %v167
    %v171 = vld [vmem:[#allocation2] sm:$0xff]
    %v172 = vld [vmem:[#allocation2 + $0x8] sm:$0xff]
    %173 = vmax.xlane.f32.xlu0 %v146
    %v174 = vpop.xlane.xlu0 %173
    %175 = vmax.xlane.f32.xlu0 %v147
    %v176 = vpop.xlane.xlu0 %175
    %v177 = vmax.f32 %v171, %v174
    %v178 = vmax.f32 %v172, %v176
    %v179 = vld [vmem:[#allocation3] sm:$0xff]
    %v180 = vld [vmem:[#allocation3 + $0x8] sm:$0xff]
    %v181 = vsub.f32 %v171, %v177
    %v182 = vsub.f32 %v172, %v178
    %v183 = vmul.f32 %v181, 1.442695
    %v184 = vpow.pop %v183
    %v185 = vmul.f32 %v182, 1.442695
    %v186 = vpow.pop %v185
    %v187 = vmul.f32 %v179, %v184
    %v188 = vmul.f32 %v180, %v186
    %190 = vset.pattern.permute.xlu0 0
    %191 = vperm.xlu0 %190, %v177
    %v192 = vpop.permute.xlu0 %191
    %195 = vset.pattern.permute.xlu0 0
    %196 = vperm.xlu0 %195, %v178
    %v197 = vpop.permute.xlu0 %196
    %v199 = vsub.f32 %v146, %v192
    %v200 = vsub.f32 %v147, %v197
    %v201 = vmul.f32 %v199, 1.442695
    %v202 = vpow.pop %v201
    %v203 = vmul.f32 %v200, 1.442695
    %v204 = vpow.pop %v203
    %205 = vadd.xlane.f32.xlu0 %v202
    %v206 = vpop.xlane.xlu0 %205
    %207 = vadd.xlane.f32.xlu0 %v204
    %v208 = vpop.xlane.xlu0 %207
    %v209 = vadd.f32 %v187, %v206
    %v210 = vadd.f32 %v188, %v208
    %211 = vst.msk [vmem:[#allocation3] sm:$0xff] %vm168, %v209
    %212 = vst.msk [vmem:[#allocation3 + $0x8] sm:$0xff] %vm168, %v210
    %213 = vst.msk [vmem:[#allocation2] sm:$0xff] %vm168, %v177
    %214 = vst.msk [vmem:[#allocation2 + $0x8] sm:$0xff] %vm168, %v178
    // Predicated region
    $region30: #{tpu_custom_call.1} parent=1 // pred_check
      %p215 = pneg %p34
    $region31: #{tpu_custom_call.1} parent=1 // pred_check_branch
      %217 = sbr.rel (%p215) target = $region33
    $region32: #{tpu_custom_call.1} parent=1 // pred_region
      %v218 = vld [vmem:[#allocation2] sm:$0xff]
      %v219 = vld [vmem:[#allocation2 + $0x8] sm:$0xff]
      %v220 = vld [vmem:[#allocation3] sm:$0xff]
      %v221 = vld [vmem:[#allocation3 + $0x8] sm:$0xff]
      %v222 = vlog2.pop %v220
      %v223 = vmul.f32 %v222, 0.6931472
      %v224 = vlog2.pop %v221
      %v225 = vmul.f32 %v224, 0.6931472
      %v226 = vadd.f32 %v218, %v223
      %v227 = vadd.f32 %v219, %v225
      %v228 = vld [vmem:[#allocation4] sm:$0xff]
      %v229 = vld [vmem:[#allocation4 + $0x8] sm:$0xff]
      %v230 = vsub.f32 %v226, %v228
      %v231 = vsub.f32 %v227, %v229
      %v232 = vld [vmem:[%s4] sm:$0xff]
      %v233 = vld [vmem:[%s4 + $0x8] sm:$0xff]
      %v234 = vmul.f32 %v230, %v232
      %v235 = vmul.f32 %v231, %v233
      %236 = vst.msk [vmem:[%s5] sm:$0xff] %vm168, %v234
      %237 = vst.msk [vmem:[%s5 + $0x8] sm:$0xff] %vm168, %v235
    $region33: #{tpu_custom_call.1} parent=1 // pred_fallthru
      _
    // Predicated region
    $region34: #{tpu_custom_call.1} parent=1 // pred_check
      _
    $region35: #{tpu_custom_call.1} parent=1 // pred_check_branch
      %239 = sbr.rel (0) target = $region37
    $region36: #{tpu_custom_call.1} parent=1 // pred_region
      _
    $region37: #{tpu_custom_call.1} parent=1 // pred_fallthru
      _
    // Predicated region
    $region38: #{tpu_custom_call.1} parent=1 // pred_check
      _
    $region39: #{tpu_custom_call.1} parent=1 // pred_check_branch
      %241 = sbr.rel (0) target = $region41
    $region40: #{tpu_custom_call.1} parent=1 // pred_region
      _
    $region41: #{tpu_custom_call.1} parent=1 // pred_fallthru
      _
    %242 = vsyncpa [#allocation6], 1

</llo_original>
